<compile_context>
chip_gen: v7x
topology: tpu7x:2x2x1
jax: 0.10.0
libtpu: 0.0.40
codegen_flags: <defaults>
</compile_context>

<pallas_src>
import jax
import jax.numpy as jnp
from jax.experimental import pallas as pl
from jax.experimental.pallas import tpu as pltpu


def critic_kernel(x_ref, w1_ref, b1_ref, w2_ref, b2_ref, o_ref):
    # First linear layer on the MXU; accumulate in f32.
    h = jnp.dot(x_ref[...], w1_ref[...], preferred_element_type=jnp.float32)
    # Bias add + hard_sigmoid (== clip(x, 0, 1)) in f32 on the VPU.
    h = jnp.clip(h + b1_ref[...], 0.0, 1.0)
    # Cast activations to the weight dtype only for the second MXU pass.
    out = jnp.dot(h.astype(w2_ref.dtype), w2_ref[...],
                  preferred_element_type=jnp.float32)
    o_ref[...] = (out + b2_ref[...]).astype(o_ref.dtype)


def critic_forward(x, w1, b1, w2, b2, *, block_b=1024, matmul_dtype=None):
    """Critic forward.

    x: [B, IN], w1: [IN, H], b1: [1, H], w2: [H, OUT], b2: [1, OUT].
    block_b: batch rows per grid step (used only when B > block_b).
    matmul_dtype: optional low-precision dtype (e.g. jnp.bfloat16) for the
                  MXU operands; accumulation / bias / clip stay in f32.
    """
    B, IN = x.shape
    H = w1.shape[1]
    OUT = w2.shape[1]
    out_dtype = x.dtype

    if matmul_dtype is not None:
        x = x.astype(matmul_dtype)
        w1 = w1.astype(matmul_dtype)
        w2 = w2.astype(matmul_dtype)
    # Biases feed the f32 accumulator directly.
    b1 = b1.astype(jnp.float32)
    b2 = b2.astype(jnp.float32)

    if B <= block_b:
        # Single invocation, full-array blocks in VMEM, no grid / no per-step
        # overhead. Full-array blocks are exempt from the (8,128) rule.
        return pl.pallas_call(
            critic_kernel,
            out_shape=jax.ShapeDtypeStruct((B, OUT), out_dtype),
        )(x, w1, b1, w2, b2)

    # Batch-tiled path: tile rows of x / out, keep weights block-invariant.
    num_blocks = pl.cdiv(B, block_b)
    b_pad = num_blocks * block_b
    if b_pad != B:
        x = jnp.pad(x, ((0, b_pad - B), (0, 0)))

    out = pl.pallas_call(
        critic_kernel,
        out_shape=jax.ShapeDtypeStruct((b_pad, OUT), out_dtype),
        grid=(num_blocks,),
        in_specs=[
            pl.BlockSpec((block_b, IN), lambda i: (i, 0)),   # x: streamed rows
            pl.BlockSpec((IN, H), lambda i: (0, 0)),         # w1: resident
            pl.BlockSpec((1, H), lambda i: (0, 0)),          # b1: resident
            pl.BlockSpec((H, OUT), lambda i: (0, 0)),        # w2: resident
            pl.BlockSpec((1, OUT), lambda i: (0, 0)),        # b2: resident
        ],
        out_specs=pl.BlockSpec((block_b, OUT), lambda i: (i, 0)),
        compiler_params=pltpu.CompilerParams(
            # Independent batch tiles -> shard across both TCs on v7x.
            dimension_semantics=("parallel",)),
    )(x, w1, b1, w2, b2)

    return out[:B] if b_pad != B else out


def critic_reference(x, w1, b1, w2, b2):
    """Pure-JAX f32 reference with the same semantics as the PyTorch module."""
    h = jnp.clip(x @ w1 + b1, 0.0, 1.0)
    return h @ w2 + b2


def init_critic_params(key, input_size, hidden_size, output_size,
                       dtype=jnp.float32):
    """nn.Linear-style init: U(-1/sqrt(fan_in), 1/sqrt(fan_in))."""
    k1, k2, k3, k4 = jax.random.split(key, 4)
    lim1 = 1.0 / jnp.sqrt(input_size)
    lim2 = 1.0 / jnp.sqrt(hidden_size)
    # stored as [in, out] (transposed relative to PyTorch's [out, in])
    w1 = jax.random.uniform(k1, (input_size, hidden_size), dtype, -lim1, lim1)
    b1 = jax.random.uniform(k2, (1, hidden_size), dtype, -lim1, lim1)
    w2 = jax.random.uniform(k3, (hidden_size, output_size), dtype, -lim2, lim2)
    b2 = jax.random.uniform(k4, (1, output_size), dtype, -lim2, lim2)
    return w1, b1, w2, b2


if __name__ == "__main__":
    INPUT, HIDDEN, OUTPUT = 16, 32, 4

    key = jax.random.PRNGKey(0)
    kx, kxl, kp = jax.random.split(key, 3)
    w1, b1, w2, b2 = init_critic_params(kp, INPUT, HIDDEN, OUTPUT)

    # --- small-batch path (single invocation, no grid) ---
    B_small = 8
    x_small = jax.random.normal(kx, (B_small, INPUT), jnp.float32)
    out_small = critic_forward(x_small, w1, b1, w2, b2)
    out_small = jax.block_until_ready(out_small)
    ref_small = critic_reference(x_small, w1, b1, w2, b2)
    assert out_small.shape == (B_small, OUTPUT)
    assert jnp.allclose(out_small, ref_small, atol=1e-5, rtol=1e-5)

    # --- batch-tiled path (grid over B, "parallel" batch axis, padded tail) ---
    B_large = 1000           # deliberately not a multiple of block_b
    x_large = jax.random.normal(kxl, (B_large, INPUT), jnp.float32)
    out_large = critic_forward(x_large, w1, b1, w2, b2, block_b=256)
    out_large = jax.block_until_ready(out_large)
    ref_large = critic_reference(x_large, w1, b1, w2, b2)
    assert out_large.shape == (B_large, OUTPUT)
    assert jnp.allclose(out_large, ref_large, atol=1e-5, rtol=1e-5)

    # --- bf16 MXU operands (f32 accumulate / bias / clip) ---
    out_bf16 = critic_forward(x_large, w1, b1, w2, b2, block_b=256,
                              matmul_dtype=jnp.bfloat16)
    out_bf16 = jax.block_until_ready(out_bf16)
    assert out_bf16.shape == (B_large, OUTPUT)
    assert out_bf16.dtype == jnp.float32
    assert jnp.allclose(out_bf16, ref_large, atol=2e-2, rtol=2e-2)

    print("KERNEL_OK")
</pallas_src>

<mosaic_0001>
module attributes {stable_mosaic.version = 11 : i64} {
  func.func @critic_kernel(%arg0: memref<8x16xf32, #tpu.memory_space<vmem>>, %arg1: memref<16x32xf32, #tpu.memory_space<vmem>>, %arg2: memref<1x32xf32, #tpu.memory_space<vmem>>, %arg3: memref<32x4xf32, #tpu.memory_space<vmem>>, %arg4: memref<1x4xf32, #tpu.memory_space<vmem>>, %arg5: memref<8x4xf32, #tpu.memory_space<vmem>>) attributes {dimension_semantics = [], scalar_prefetch = 0 : i64, scratch_operands = 0 : i64, tpu.core_type = #tpu.core_type<tc>} {
    %c0 = arith.constant 0 : index
    %c0_0 = arith.constant 0 : index
    %0 = vector.load %arg0[%c0, %c0_0] : memref<8x16xf32, #tpu.memory_space<vmem>>, vector<8x16xf32>
    %c0_1 = arith.constant 0 : index
    %c0_2 = arith.constant 0 : index
    %1 = vector.load %arg1[%c0_1, %c0_2] : memref<16x32xf32, #tpu.memory_space<vmem>>, vector<16x32xf32>
    %cst = arith.constant dense<0.000000e+00> : vector<8x32xf32>
    %2 = tpu.matmul %0, %1, %cst {dimension_numbers = #tpu.dot_dimension_numbers<[1], [0], [0], [1], [0, 0, 1, 1], [], []>} : vector<8x16xf32>, vector<16x32xf32>, vector<8x32xf32> -> vector<8x32xf32>
    %c0_3 = arith.constant 0 : index
    %c0_4 = arith.constant 0 : index
    %3 = vector.load %arg2[%c0_3, %c0_4] : memref<1x32xf32, #tpu.memory_space<vmem>>, vector<1x32xf32>
    %4 = vector.broadcast %3 : vector<1x32xf32> to vector<8x32xf32>
    %5 = arith.addf %2, %4 : vector<8x32xf32>
    %cst_5 = arith.constant 0.000000e+00 : f32
    %cst_6 = arith.constant 1.000000e+00 : f32
    %6 = vector.broadcast %cst_5 : f32 to vector<8x32xf32>
    %7 = arith.maximumf %6, %5 : vector<8x32xf32>
    %8 = vector.broadcast %cst_6 : f32 to vector<8x32xf32>
    %9 = arith.minimumf %8, %7 : vector<8x32xf32>
    %c0_7 = arith.constant 0 : index
    %c0_8 = arith.constant 0 : index
    %10 = vector.load %arg3[%c0_7, %c0_8] : memref<32x4xf32, #tpu.memory_space<vmem>>, vector<32x4xf32>
    %cst_9 = arith.constant dense<0.000000e+00> : vector<8x4xf32>
    %11 = tpu.matmul %9, %10, %cst_9 {dimension_numbers = #tpu.dot_dimension_numbers<[1], [0], [0], [1], [0, 0, 1, 1], [], []>} : vector<8x32xf32>, vector<32x4xf32>, vector<8x4xf32> -> vector<8x4xf32>
    %c0_10 = arith.constant 0 : index
    %c0_11 = arith.constant 0 : index
    %12 = vector.load %arg4[%c0_10, %c0_11] : memref<1x4xf32, #tpu.memory_space<vmem>>, vector<1x4xf32>
    %13 = vector.broadcast %12 : vector<1x4xf32> to vector<8x4xf32>
    %14 = arith.addf %11, %13 : vector<8x4xf32>
    %c0_12 = arith.constant 0 : index
    %c0_13 = arith.constant 0 : index
    %15 = vector.load %arg5[%c0_12, %c0_13] : memref<8x4xf32, #tpu.memory_space<vmem>>, vector<8x4xf32>
    tpu.vector_store %arg5[%c0_12, %c0_13], %14 {strides = array<i32>} : memref<8x4xf32, #tpu.memory_space<vmem>>, vector<8x4xf32>,
    return
  }
}

</mosaic_0001>

<llo_original>
// kernel: tpu_custom_call.1
$region0: #{tpu_custom_call.1}
  #allocation0 [shape = 'u32[]', space=smem, size = 0x4, offset = 0x4, fixed_abs, tag = 'smem constant byte address 0x4 - core index']
  #allocation1 [shape = 'u32[144,128]{1,0:T(1,128)}', space=vmem, size = 0x12000, scoped, tag = 'internal scratch']
  %s0 = inlined_call_operand.vmem [shape: f32[8,16], index: 0, kind: input, shape index: {}]
  %s1 = inlined_call_operand.vmem [shape: f32[16,32], index: 1, kind: input, shape index: {}]
  %s2 = inlined_call_operand.vmem [shape: f32[1,32], index: 2, kind: input, shape index: {}]
  %s3 = inlined_call_operand.vmem [shape: f32[32,4], index: 3, kind: input, shape index: {}]
  %s4 = inlined_call_operand.vmem [shape: f32[1,4], index: 4, kind: input, shape index: {}]
  %s5 = inlined_call_operand.vmem [shape: f32[8,4], index: 5, kind: output, shape index: {}]
  %s6 = sld [smem:[#allocation0]]
  $region30: #{tpu_custom_call.1} parent=0
    _
  %s8 = ssub.s32 1, %s6
  %s9 = scalar_select 0, %s8, %s6
  // Predicated region
  $region2: #{tpu_custom_call.1} parent=0 // pred_check
    _
  $region3: #{tpu_custom_call.1} parent=0 // pred_check_branch
    %11 = sbr.rel (0) target = $region5
  $region4: #{tpu_custom_call.1} parent=0 // pred_region
    _
  $region5: #{tpu_custom_call.1} parent=0 // pred_fallthru
    _
  // Predicated region
  $region6: #{tpu_custom_call.1} parent=0 // pred_check
    _
  $region7: #{tpu_custom_call.1} parent=0 // pred_check_branch
    %13 = sbr.rel (0) target = $region9
  $region8: #{tpu_custom_call.1} parent=0 // pred_region
    _
  $region9: #{tpu_custom_call.1} parent=0 // pred_fallthru
    _
  // Predicated region
  $region10: #{tpu_custom_call.1} parent=0 // pred_check
    _
  $region11: #{tpu_custom_call.1} parent=0 // pred_check_branch
    %15 = sbr.rel (0) target = $region13
  $region12: #{tpu_custom_call.1} parent=0 // pred_region
    _
  $region13: #{tpu_custom_call.1} parent=0 // pred_fallthru
    _
  // Predicated region
  $region14: #{tpu_custom_call.1} parent=0 // pred_check
    _
  $region15: #{tpu_custom_call.1} parent=0 // pred_check_branch
    %17 = sbr.rel (0) target = $region17
  $region16: #{tpu_custom_call.1} parent=0 // pred_region
    _
  $region17: #{tpu_custom_call.1} parent=0 // pred_fallthru
    _
  // Predicated region
  $region18: #{tpu_custom_call.1} parent=0 // pred_check
    _
  $region19: #{tpu_custom_call.1} parent=0 // pred_check_branch
    %19 = sbr.rel (0) target = $region21
  $region20: #{tpu_custom_call.1} parent=0 // pred_region
    _
  $region21: #{tpu_custom_call.1} parent=0 // pred_fallthru
    _
  %v20 = vld [vmem:[%s0] sm:$0xff]
  %v21 = vld [vmem:[%s1] sm:$0xff]
  %v22 = vld [vmem:[%s1 + $0x8] sm:$0xff]
  %v23 = vld [vmem:[%s2] sm:$0x1]
  %v25 = vlaneseq
  %v26 = vshrl.u32 %v25, 7
  %v27 = vsub.s32 0, %v26
  %v28 = vrot.slane %v23, %v27
  %vm30 = vcmask 130048
  %v32 = vsel %vm30, %v20, 0
  %34 = vmatprep.subr.mxu0 0.0
  %35 = vmatpush1.msra.mxu0 %v21
  %36 = vmatprep.subr.mxu0 0.0
  %37 = vmatpush1.msra.mxu0 %v22
  %38 = vmatprep.subr.mxu0 0.0
  %39 = vmatpush1.msra.mxu0 0.0
  %40 = vmatprep.subr.mxu0 0.0
  %41 = vmatpush1.msra.mxu0 0.0
  %42 = vmatprep.subr.mxu0 0.0
  %43 = vmatpush1.msra.mxu0 0.0
  %44 = vmatprep.subr.mxu0 0.0
  %45 = vmatpush1.msra.mxu0 0.0
  %46 = vmatprep.subr.mxu0 0.0
  %47 = vmatpush1.msra.mxu0 0.0
  %48 = vmatprep.subr.mxu0 0.0
  %49 = vmatpush1.msra.mxu0 0.0
  %50 = vmatprep.subr.mxu0 0.0
  %51 = vmatpush1.msra.mxu0 0.0
  %52 = vmatprep.subr.mxu0 0.0
  %53 = vmatpush1.msra.mxu0 0.0
  %54 = vmatprep.subr.mxu0 0.0
  %55 = vmatpush1.msra.mxu0 0.0
  %56 = vmatprep.subr.mxu0 0.0
  %57 = vmatpush1.msra.mxu0 0.0
  %58 = vmatprep.subr.mxu0 0.0
  %59 = vmatpush1.msra.mxu0 0.0
  %60 = vmatprep.subr.mxu0 0.0
  %61 = vmatpush1.msra.mxu0 0.0
  %62 = vmatprep.subr.mxu0 0.0
  %63 = vmatpush1.msra.mxu0 0.0
  %64 = vmatprep.subr.mxu0 0.0
  %65 = vmatpush1.msra.mxu0 0.0
  %66 = vmatprep.subr.mxu0 0.0
  %67 = vmatpush1.msra.mxu0 0.0
  %68 = vmatprep.subr.mxu0 0.0
  %69 = vmatpush1.msra.mxu0 0.0
  %70 = vmatprep.subr.mxu0 0.0
  %71 = vmatpush1.msra.mxu0 0.0
  %72 = vmatprep.subr.mxu0 0.0
  %73 = vmatpush1.msra.mxu0 0.0
  %74 = vmatprep.subr.mxu0 0.0
  %75 = vmatpush1.msra.mxu0 0.0
  %76 = vmatprep.subr.mxu0 0.0
  %77 = vmatpush1.msra.mxu0 0.0
  %78 = vmatprep.subr.mxu0 0.0
  %79 = vmatpush1.msra.mxu0 0.0
  %80 = vmatprep.subr.mxu0 0.0
  %81 = vmatpush1.msra.mxu0 0.0
  %82 = vmatprep.subr.mxu0 0.0
  %83 = vmatpush1.msra.mxu0 0.0
  %84 = vmatprep.subr.mxu0 0.0
  %85 = vmatpush1.msra.mxu0 0.0
  %86 = vmatprep.subr.mxu0 0.0
  %87 = vmatpush1.msra.mxu0 0.0
  %88 = vmatprep.subr.mxu0 0.0
  %89 = vmatpush1.msra.mxu0 0.0
  %90 = vmatprep.subr.mxu0 0.0
  %91 = vmatpush1.msra.mxu0 0.0
  %92 = vmatprep.subr.mxu0 0.0
  %93 = vmatpush1.msra.mxu0 0.0
  %94 = vmatprep.subr.mxu0 0.0
  %95 = vmatpush1.msra.mxu0 0.0
  %96 = vmatprep.subr.mxu0 0.0
  %97 = vmatpush1.msra.mxu0 0.0
  %98 = vmatprep.mubr.f32.mxu0 0.0
  %99 = vmatmul.mubr.f32.gmra.mrb[0].mxu0 %v32
  %v100 = vpop.f32.mrb[0].mxu0
  %v101 = vadd.f32 %v28, %v100
  %v102 = vpop.f32.mrb[0].mxu0
  %103 = vdwg.mxu0
  %v104 = vmax.f32 %v101, 0.0
  %v105 = vmin.f32 %v104, 1.0
  %v106 = vld [vmem:[%s3] sm:$0xff]
  %v107 = vld [vmem:[%s3 + $0x8] sm:$0xff]
  %v108 = vld [vmem:[%s3 + $0x10] sm:$0xff]
  %v109 = vld [vmem:[%s3 + $0x18] sm:$0xff]
  %v110 = vld [vmem:[%s4] sm:$0x1]
  %v112 = vlaneseq
  %v113 = vshrl.u32 %v112, 7
  %v114 = vsub.s32 0, %v113
  %v115 = vrot.slane %v110, %v114
  %vm117 = vcmask 261120
  %v119 = vsel %vm117, %v105, 0
  %121 = vmatprep.subr.mxu0 0.0
  %122 = vmatpush1.msra.mxu0 %v106
  %123 = vmatprep.subr.mxu0 0.0
  %124 = vmatpush1.msra.mxu0 %v107
  %125 = vmatprep.subr.mxu0 0.0
  %126 = vmatpush1.msra.mxu0 %v108
  %127 = vmatprep.subr.mxu0 0.0
  %128 = vmatpush1.msra.mxu0 %v109
  %129 = vmatprep.subr.mxu0 0.0
  %130 = vmatpush1.msra.mxu0 0.0
  %131 = vmatprep.subr.mxu0 0.0
  %132 = vmatpush1.msra.mxu0 0.0
  %133 = vmatprep.subr.mxu0 0.0
  %134 = vmatpush1.msra.mxu0 0.0
  %135 = vmatprep.subr.mxu0 0.0
  %136 = vmatpush1.msra.mxu0 0.0
  %137 = vmatprep.subr.mxu0 0.0
  %138 = vmatpush1.msra.mxu0 0.0
  %139 = vmatprep.subr.mxu0 0.0
  %140 = vmatpush1.msra.mxu0 0.0
  %141 = vmatprep.subr.mxu0 0.0
  %142 = vmatpush1.msra.mxu0 0.0
  %143 = vmatprep.subr.mxu0 0.0
  %144 = vmatpush1.msra.mxu0 0.0
  %145 = vmatprep.subr.mxu0 0.0
  %146 = vmatpush1.msra.mxu0 0.0
  %147 = vmatprep.subr.mxu0 0.0
  %148 = vmatpush1.msra.mxu0 0.0
  %149 = vmatprep.subr.mxu0 0.0
  %150 = vmatpush1.msra.mxu0 0.0
  %151 = vmatprep.subr.mxu0 0.0
  %152 = vmatpush1.msra.mxu0 0.0
  %153 = vmatprep.subr.mxu0 0.0
  %154 = vmatpush1.msra.mxu0 0.0
  %155 = vmatprep.subr.mxu0 0.0
  %156 = vmatpush1.msra.mxu0 0.0
  %157 = vmatprep.subr.mxu0 0.0
  %158 = vmatpush1.msra.mxu0 0.0
  %159 = vmatprep.subr.mxu0 0.0
  %160 = vmatpush1.msra.mxu0 0.0
  %161 = vmatprep.subr.mxu0 0.0
  %162 = vmatpush1.msra.mxu0 0.0
  %163 = vmatprep.subr.mxu0 0.0
  %164 = vmatpush1.msra.mxu0 0.0
  %165 = vmatprep.subr.mxu0 0.0
  %166 = vmatpush1.msra.mxu0 0.0
  %167 = vmatprep.subr.mxu0 0.0
  %168 = vmatpush1.msra.mxu0 0.0
  %169 = vmatprep.subr.mxu0 0.0
  %170 = vmatpush1.msra.mxu0 0.0
  %171 = vmatprep.subr.mxu0 0.0
  %172 = vmatpush1.msra.mxu0 0.0
  %173 = vmatprep.subr.mxu0 0.0
  %174 = vmatpush1.msra.mxu0 0.0
  %175 = vmatprep.subr.mxu0 0.0
  %176 = vmatpush1.msra.mxu0 0.0
  %177 = vmatprep.subr.mxu0 0.0
  %178 = vmatpush1.msra.mxu0 0.0
  %179 = vmatprep.subr.mxu0 0.0
  %180 = vmatpush1.msra.mxu0 0.0
  %181 = vmatprep.subr.mxu0 0.0
  %182 = vmatpush1.msra.mxu0 0.0
  %183 = vmatprep.subr.mxu0 0.0
  %184 = vmatpush1.msra.mxu0 0.0
  %185 = vmatprep.mubr.f32.mxu0 0.0
  %186 = vmatmul.mubr.f32.gmra.mrb[0].mxu0 %v119
  %v187 = vpop.f32.mrb[0].mxu0
  %v188 = vadd.f32 %v115, %v187
  %v189 = vpop.f32.mrb[0].mxu0
  %190 = vdwg.mxu0
  %vm191 = vcmask 31744
  %192 = vst.msk [vmem:[%s5] sm:$0xff] %vm191, %v188
  // Predicated region
  $region22: #{tpu_custom_call.1} parent=0 // pred_check
    _
  $region23: #{tpu_custom_call.1} parent=0 // pred_check_branch
    %194 = sbr.rel (0) target = $region25
  $region24: #{tpu_custom_call.1} parent=0 // pred_region
    _
  $region25: #{tpu_custom_call.1} parent=0 // pred_fallthru
    _
  // Predicated region
  $region26: #{tpu_custom_call.1} parent=0 // pred_check
    _
  $region27: #{tpu_custom_call.1} parent=0 // pred_check_branch
    %196 = sbr.rel (0) target = $region29
  $region28: #{tpu_custom_call.1} parent=0 // pred_region
    _
  $region29: #{tpu_custom_call.1} parent=0 // pred_fallthru
    _

</llo_original>
